<compile_context>
chip_gen: v7x
topology: tpu7x:2x2x1
jax: 0.10.0
libtpu: 0.0.40
codegen_flags: <defaults>
</compile_context>

<pallas_src>
import functools

import jax
import jax.numpy as jnp
from jax.experimental import pallas as pl
from jax.experimental.pallas import tpu as pltpu


def _round_up(n, m):
    return ((n + m - 1) // m) * m


def critic_kernel(x_ref, w1_ref, b1_ref, w2_ref, b2_ref, w3_ref, b3_ref, o_ref):
    # x_ref:  (TILE_B, state_dim)  VMEM, pipelined over the batch grid
    # w1_ref: (state_dim, 64)      VMEM, resident (constant index_map)
    # b1_ref: (1, 64)              VMEM, resident, f32
    # w2_ref: (64, 32)             VMEM, resident, f32
    # b2_ref: (1, 32)              VMEM, resident, f32
    # w3_ref: (32, 1)              VMEM, resident, f32 (column form)
    # b3_ref: (1,)                 SMEM scalar, f32
    # o_ref:  (TILE_B, 1)          VMEM output block, f32 (PyTorch [B, 1] layout)
    #
    # All three contractions go to the MXU with f32 accumulation; bias add and
    # ReLU are f32 on the VPU.  No in-kernel dtype casts (kernel is not
    # MXU-bound, so extra VPU pack/unpack work only hurts).
    h1 = jnp.dot(x_ref[...], w1_ref[...],
                 preferred_element_type=jnp.float32) + b1_ref[...]
    h1 = jnp.maximum(h1, 0.0)

    h2 = jnp.dot(h1, w2_ref[...],
                 preferred_element_type=jnp.float32) + b2_ref[...]
    h2 = jnp.maximum(h2, 0.0)

    # Final Linear(32, 1) on the MXU (N=1 matmul) — the MXU is otherwise idle,
    # and this avoids the XLU lane reduction + relayout of the old path.
    v = jnp.dot(h2, w3_ref[...],
                preferred_element_type=jnp.float32) + b3_ref[0]
    o_ref[...] = v.astype(o_ref.dtype)


def critic_forward(x, params, *, tile_b_max=4096, bf16_inputs=False):
    """x: [B, state_dim] -> [B, 1] float32 (matches the PyTorch module)."""
    w1, b1, w2, b2, w3, b3 = params
    B, state_dim = x.shape

    if bf16_inputs:
        # Halves the dominant HBM stream (X reads).  Ideally the caller keeps X
        # in bf16 in HBM (e.g. bf16 replay buffer) so this cast fuses upstream;
        # the W1 cast is one-time.  Accumulation / biases / later layers stay f32.
        x = x.astype(jnp.bfloat16)
        w1 = w1.astype(jnp.bfloat16)

    # ---- batch tiling (no padding; last block may be ragged) ----------------
    b_round = _round_up(B, 128)
    num_tiles = pl.cdiv(b_round, tile_b_max)
    if b_round >= 256:
        # >= 2 tiles so ("parallel",) splits the grid across both v7x
        # TensorCores; near-free on single-core v5e/v6e.
        num_tiles = max(num_tiles, 2)
        tile_b = _round_up(pl.cdiv(b_round, num_tiles), 128)
    else:
        # Tiny batch: one block equal to the full array (no raggedness).
        tile_b = B
    grid = (pl.cdiv(B, tile_b),)

    w3_col = w3.reshape(-1, 1)           # (32, 1) column for the MXU dot
    b3_s = b3.reshape(1)                 # scalar, lives in SMEM

    flops = 2 * B * (state_dim * 64 + 64 * 32 + 32 * 1)
    bytes_accessed = int(
        B * state_dim * x.dtype.itemsize                    # X read
        + B * 4                                              # output write
        + sum(int(p.size) * p.dtype.itemsize
              for p in (w1, b1, w2, b2, w3, b3))             # resident params
    )

    out = pl.pallas_call(
        critic_kernel,
        out_shape=jax.ShapeDtypeStruct((B, 1), jnp.float32),
        grid=grid,
        in_specs=[
            pl.BlockSpec((tile_b, state_dim), lambda i: (i, 0)),   # X: pipelined tile
            pl.BlockSpec((state_dim, 64), lambda i: (0, 0)),       # W1 resident
            pl.BlockSpec((1, 64), lambda i: (0, 0)),               # b1 resident
            pl.BlockSpec((64, 32), lambda i: (0, 0)),              # W2 resident
            pl.BlockSpec((1, 32), lambda i: (0, 0)),               # b2 resident
            pl.BlockSpec((32, 1), lambda i: (0, 0)),               # w3 column resident
            pl.BlockSpec(memory_space=pltpu.MemorySpace.SMEM),     # b3 scalar
        ],
        out_specs=pl.BlockSpec((tile_b, 1), lambda i: (i, 0)),     # native [B,1] layout
        compiler_params=pltpu.CompilerParams(
            dimension_semantics=("parallel",),                     # v7x megacore
            vmem_limit_bytes=48 * 1024 * 1024,                     # headroom for big tiles
        ),
        cost_estimate=pl.CostEstimate(
            flops=int(flops), transcendentals=0, bytes_accessed=bytes_accessed),
    )(x, w1, b1, w2, b2, w3_col, b3_s)

    return out


def init_critic_params(key, state_dim):
    """Deterministic parameter init (PyTorch-style uniform fan-in bounds)."""
    def linear_init(k, fan_in, fan_out, bias_shape):
        k_w, k_b = jax.random.split(k)
        bound = 1.0 / jnp.sqrt(jnp.float32(fan_in))
        # stored as [in, out] so the kernel computes x @ W + b
        w = jax.random.uniform(k_w, (fan_in, fan_out), jnp.float32, -bound, bound)
        b = jax.random.uniform(k_b, bias_shape, jnp.float32, -bound, bound)
        return w, b

    k1, k2, k3 = jax.random.split(key, 3)
    w1, b1 = linear_init(k1, state_dim, 64, (1, 64))
    w2, b2 = linear_init(k2, 64, 32, (1, 32))
    w3, b3 = linear_init(k3, 32, 1, (1,))
    return (w1, b1, w2, b2, w3, b3)


def critic_reference(x, params):
    """Pure-JAX reference for correctness checking."""
    w1, b1, w2, b2, w3, b3 = params
    h1 = jnp.maximum(x @ w1 + b1, 0.0)
    h2 = jnp.maximum(h1 @ w2 + b2, 0.0)
    return h2 @ w3 + b3            # b3 (1,) broadcasts -> (B, 1)


if __name__ == "__main__":
    # Small shapes consistent with the module: the env's flattened state
    # vector -> state_dim = 48; batch of 8 states.
    # TODO(synk): env loading / flatNumpyState are host-side preprocessing, not kernel work.
    batch = 8
    state_dim = 48

    key = jax.random.PRNGKey(0)
    k_params, k_x, k_x2 = jax.random.split(key, 3)

    params = init_critic_params(k_params, state_dim)
    x = jax.random.normal(k_x, (batch, state_dim), dtype=jnp.float32)

    # f32 path (exact module semantics), single full-array block.
    out = jax.block_until_ready(critic_forward(x, params))
    ref = critic_reference(x, params)
    assert out.shape == (batch, 1), out.shape
    assert jnp.allclose(out, ref, atol=1e-5, rtol=1e-5), "f32 mismatch vs reference"

    # bf16-input path (halved X HBM stream), f32 accumulation -> loose tol.
    out_bf16 = jax.block_until_ready(critic_forward(x, params, bf16_inputs=True))
    assert out_bf16.shape == (batch, 1), out_bf16.shape
    assert jnp.allclose(out_bf16, ref, atol=5e-2, rtol=5e-2), "bf16 mismatch vs reference"

    # Mid-size batch: exercises the >=2-tile (megacore) path with a ragged
    # (masked-store) final block and no padding.
    mid = 777
    xm = jax.random.normal(k_x, (mid, state_dim), dtype=jnp.float32)
    out_mid = jax.block_until_ready(critic_forward(xm, params))
    ref_mid = critic_reference(xm, params)
    assert out_mid.shape == (mid, 1), out_mid.shape
    assert jnp.allclose(out_mid, ref_mid, atol=1e-4, rtol=1e-4), "mid-batch mismatch vs reference"

    # Large ragged batch: multiple tiles, minimal-overshoot tile_b, ragged last block.
    big_batch = 9000
    xb = jax.random.normal(k_x2, (big_batch, state_dim), dtype=jnp.float32)
    out_big = jax.block_until_ready(critic_forward(xb, params))
    ref_big = critic_reference(xb, params)
    assert out_big.shape == (big_batch, 1), out_big.shape
    assert jnp.allclose(out_big, ref_big, atol=1e-4, rtol=1e-4), "tiled mismatch vs reference"

    print("KERNEL_OK")
</pallas_src>

<mosaic_0001>
module attributes {stable_mosaic.version = 11 : i64} {
  func.func @critic_kernel(%arg0: i32, %arg1: memref<8x48xf32, #tpu.memory_space<vmem>>, %arg2: memref<48x64xf32, #tpu.memory_space<vmem>>, %arg3: memref<1x64xf32, #tpu.memory_space<vmem>>, %arg4: memref<64x32xf32, #tpu.memory_space<vmem>>, %arg5: memref<1x32xf32, #tpu.memory_space<vmem>>, %arg6: memref<32x1xf32, #tpu.memory_space<vmem>>, %arg7: memref<1xf32, #tpu.memory_space<smem>>, %arg8: memref<8x1xf32, #tpu.memory_space<vmem>>) attributes {dimension_semantics = [#tpu.dimension_semantics<parallel>], iteration_bounds = array<i64: 1>, scalar_prefetch = 0 : i64, scratch_operands = 0 : i64, tpu.core_type = #tpu.core_type<tc>, window_params = [{transform_indices = @transform_0, window_bounds = array<i64: 8, 48>}, {pipeline_mode = #tpu.pipeline_mode<synchronous>, transform_indices = @transform_1, window_bounds = array<i64: 48, 64>}, {pipeline_mode = #tpu.pipeline_mode<synchronous>, transform_indices = @transform_2, window_bounds = array<i64: 1, 64>}, {pipeline_mode = #tpu.pipeline_mode<synchronous>, transform_indices = @transform_3, window_bounds = array<i64: 64, 32>}, {pipeline_mode = #tpu.pipeline_mode<synchronous>, transform_indices = @transform_4, window_bounds = array<i64: 1, 32>}, {pipeline_mode = #tpu.pipeline_mode<synchronous>, transform_indices = @transform_5, window_bounds = array<i64: 32, 1>}, {transform_indices = @transform_6, window_bounds = array<i64: 1>}, {transform_indices = @transform_7, window_bounds = array<i64: 8, 1>}]} {
    %c0 = arith.constant 0 : index
    %c0_0 = arith.constant 0 : index
    %0 = vector.load %arg1[%c0, %c0_0] : memref<8x48xf32, #tpu.memory_space<vmem>>, vector<8x48xf32>
    %c0_1 = arith.constant 0 : index
    %c0_2 = arith.constant 0 : index
    %1 = vector.load %arg2[%c0_1, %c0_2] : memref<48x64xf32, #tpu.memory_space<vmem>>, vector<48x64xf32>
    %cst = arith.constant dense<0.000000e+00> : vector<8x64xf32>
    %2 = tpu.matmul %0, %1, %cst {dimension_numbers = #tpu.dot_dimension_numbers<[1], [0], [0], [1], [0, 0, 1, 1], [], []>} : vector<8x48xf32>, vector<48x64xf32>, vector<8x64xf32> -> vector<8x64xf32>
    %c0_3 = arith.constant 0 : index
    %c0_4 = arith.constant 0 : index
    %3 = vector.load %arg3[%c0_3, %c0_4] : memref<1x64xf32, #tpu.memory_space<vmem>>, vector<1x64xf32>
    %4 = vector.broadcast %3 : vector<1x64xf32> to vector<8x64xf32>
    %5 = arith.addf %2, %4 : vector<8x64xf32>
    %cst_5 = arith.constant 0.000000e+00 : f32
    %6 = vector.broadcast %cst_5 : f32 to vector<8x64xf32>
    %7 = arith.maximumf %5, %6 : vector<8x64xf32>
    %c0_6 = arith.constant 0 : index
    %c0_7 = arith.constant 0 : index
    %8 = vector.load %arg4[%c0_6, %c0_7] : memref<64x32xf32, #tpu.memory_space<vmem>>, vector<64x32xf32>
    %cst_8 = arith.constant dense<0.000000e+00> : vector<8x32xf32>
    %9 = tpu.matmul %7, %8, %cst_8 {dimension_numbers = #tpu.dot_dimension_numbers<[1], [0], [0], [1], [0, 0, 1, 1], [], []>} : vector<8x64xf32>, vector<64x32xf32>, vector<8x32xf32> -> vector<8x32xf32>
    %c0_9 = arith.constant 0 : index
    %c0_10 = arith.constant 0 : index
    %10 = vector.load %arg5[%c0_9, %c0_10] : memref<1x32xf32, #tpu.memory_space<vmem>>, vector<1x32xf32>
    %11 = vector.broadcast %10 : vector<1x32xf32> to vector<8x32xf32>
    %12 = arith.addf %9, %11 : vector<8x32xf32>
    %cst_11 = arith.constant 0.000000e+00 : f32
    %13 = vector.broadcast %cst_11 : f32 to vector<8x32xf32>
    %14 = arith.maximumf %12, %13 : vector<8x32xf32>
    %c0_12 = arith.constant 0 : index
    %c0_13 = arith.constant 0 : index
    %15 = vector.load %arg6[%c0_12, %c0_13] : memref<32x1xf32, #tpu.memory_space<vmem>>, vector<32x1xf32>
    %cst_14 = arith.constant dense<0.000000e+00> : vector<8x1xf32>
    %16 = tpu.matmul %14, %15, %cst_14 {dimension_numbers = #tpu.dot_dimension_numbers<[1], [0], [0], [1], [0, 0, 1, 1], [], []>} : vector<8x32xf32>, vector<32x1xf32>, vector<8x1xf32> -> vector<8x1xf32>
    %c0_15 = arith.constant 0 : index
    %17 = memref.load %arg7[%c0_15] : memref<1xf32, #tpu.memory_space<smem>>
    %18 = vector.broadcast %17 : f32 to vector<8x1xf32>
    %19 = arith.addf %16, %18 : vector<8x1xf32>
    %c0_16 = arith.constant 0 : index
    %c0_17 = arith.constant 0 : index
    %20 = vector.load %arg8[%c0_16, %c0_17] : memref<8x1xf32, #tpu.memory_space<vmem>>, vector<8x1xf32>
    tpu.vector_store %arg8[%c0_16, %c0_17], %19 {strides = array<i32>} : memref<8x1xf32, #tpu.memory_space<vmem>>, vector<8x1xf32>,
    return
  }
  func.func @transform_0(%arg0: i32) -> (i32, i32) {
    %c0_i32 = arith.constant 0 : i32
    %c0_i32_0 = arith.constant 0 : i32
    return %arg0, %c0_i32 : i32, i32
  }
  func.func @transform_1(%arg0: i32) -> (i32, i32) {
    %c0_i32 = arith.constant 0 : i32
    %c0_i32_0 = arith.constant 0 : i32
    %c0_i32_1 = arith.constant 0 : i32
    return %c0_i32, %c0_i32_0 : i32, i32
  }
  func.func @transform_2(%arg0: i32) -> (i32, i32) {
    %c0_i32 = arith.constant 0 : i32
    %c0_i32_0 = arith.constant 0 : i32
    %c0_i32_1 = arith.constant 0 : i32
    return %c0_i32, %c0_i32_0 : i32, i32
  }
  func.func @transform_3(%arg0: i32) -> (i32, i32) {
    %c0_i32 = arith.constant 0 : i32
    %c0_i32_0 = arith.constant 0 : i32
    %c0_i32_1 = arith.constant 0 : i32
    return %c0_i32, %c0_i32_0 : i32, i32
  }
  func.func @transform_4(%arg0: i32) -> (i32, i32) {
    %c0_i32 = arith.constant 0 : i32
    %c0_i32_0 = arith.constant 0 : i32
    %c0_i32_1 = arith.constant 0 : i32
    return %c0_i32, %c0_i32_0 : i32, i32
  }
  func.func @transform_5(%arg0: i32) -> (i32, i32) {
    %c0_i32 = arith.constant 0 : i32
    %c0_i32_0 = arith.constant 0 : i32
    %c0_i32_1 = arith.constant 0 : i32
    return %c0_i32, %c0_i32_0 : i32, i32
  }
  func.func @transform_6(%arg0: i32) -> i32 {
    %c0_i32 = arith.constant 0 : i32
    %c0_i32_0 = arith.constant 0 : i32
    return %c0_i32 : i32
  }
  func.func @transform_7(%arg0: i32) -> (i32, i32) {
    %c0_i32 = arith.constant 0 : i32
    %c0_i32_0 = arith.constant 0 : i32
    return %arg0, %c0_i32 : i32, i32
  }
}

</mosaic_0001>

<llo_original>
// kernel: tpu_custom_call.1
$region0: #{tpu_custom_call.1}
  #allocation0 [shape = 'u32[]', space=smem, size = 0x4, offset = 0x4, fixed_abs, tag = 'smem constant byte address 0x4 - core index']
  #allocation1 [shape = 'u32[144,128]{1,0:T(1,128)}', space=vmem, size = 0x12000, scoped, tag = 'internal scratch']
  #allocation2 [shape = 'f32[1]{0:T(128)S(6)}', space=smem, size = 0x200, scoped, tag = 'scoped memory for tpu_custom_call.1']
  %s0 = inlined_call_operand.vmem [shape: f32[8,48], index: 0, kind: input, shape index: {}]
  %s1 = inlined_call_operand.vmem [shape: f32[48,64], index: 1, kind: input, shape index: {}]
  %s2 = inlined_call_operand.vmem [shape: f32[1,64], index: 2, kind: input, shape index: {}]
  %s3 = inlined_call_operand.vmem [shape: f32[64,32], index: 3, kind: input, shape index: {}]
  %s4 = inlined_call_operand.vmem [shape: f32[1,32], index: 4, kind: input, shape index: {}]
  %s5 = inlined_call_operand.vmem [shape: f32[32,1], index: 5, kind: input, shape index: {}]
  %s6 = inlined_call_operand.<no memory space> [shape: f32[1], index: 6, kind: input, shape index: {}]
  %s7 = inlined_call_operand.vmem [shape: f32[8,1], index: 7, kind: output, shape index: {}]
  %s8 = sld [smem:[#allocation0]]
  $region38: #{tpu_custom_call.1} parent=0
    _
  %s10 = ssub.s32 1, %s8
  %s11 = scalar_select 0, %s10, %s8
  %12 = sst [smem:[#allocation2]] %s6
  // Predicated region
  $region2: #{tpu_custom_call.1} parent=0 // pred_check
    _
  $region3: #{tpu_custom_call.1} parent=0 // pred_check_branch
    %14 = sbr.rel (0) target = $region5
  $region4: #{tpu_custom_call.1} parent=0 // pred_region
    _
  $region5: #{tpu_custom_call.1} parent=0 // pred_fallthru
    _
  // Predicated region
  $region6: #{tpu_custom_call.1} parent=0 // pred_check
    _
  $region7: #{tpu_custom_call.1} parent=0 // pred_check_branch
    %16 = sbr.rel (0) target = $region9
  $region8: #{tpu_custom_call.1} parent=0 // pred_region
    _
  $region9: #{tpu_custom_call.1} parent=0 // pred_fallthru
    _
  // Predicated region
  $region10: #{tpu_custom_call.1} parent=0 // pred_check
    _
  $region11: #{tpu_custom_call.1} parent=0 // pred_check_branch
    %18 = sbr.rel (0) target = $region13
  $region12: #{tpu_custom_call.1} parent=0 // pred_region
    _
  $region13: #{tpu_custom_call.1} parent=0 // pred_fallthru
    _
  // Predicated region
  $region14: #{tpu_custom_call.1} parent=0 // pred_check
    _
  $region15: #{tpu_custom_call.1} parent=0 // pred_check_branch
    %20 = sbr.rel (0) target = $region17
  $region16: #{tpu_custom_call.1} parent=0 // pred_region
    _
  $region17: #{tpu_custom_call.1} parent=0 // pred_fallthru
    _
  // Predicated region
  $region18: #{tpu_custom_call.1} parent=0 // pred_check
    _
  $region19: #{tpu_custom_call.1} parent=0 // pred_check_branch
    %22 = sbr.rel (0) target = $region21
  $region20: #{tpu_custom_call.1} parent=0 // pred_region
    _
  $region21: #{tpu_custom_call.1} parent=0 // pred_fallthru
    _
  // Predicated region
  $region22: #{tpu_custom_call.1} parent=0 // pred_check
    _
  $region23: #{tpu_custom_call.1} parent=0 // pred_check_branch
    %24 = sbr.rel (0) target = $region25
  $region24: #{tpu_custom_call.1} parent=0 // pred_region
    _
  $region25: #{tpu_custom_call.1} parent=0 // pred_fallthru
    _
  // Predicated region
  $region26: #{tpu_custom_call.1} parent=0 // pred_check
    _
  $region27: #{tpu_custom_call.1} parent=0 // pred_check_branch
    %26 = sbr.rel (0) target = $region29
  $region28: #{tpu_custom_call.1} parent=0 // pred_region
    _
  $region29: #{tpu_custom_call.1} parent=0 // pred_fallthru
    _
  %v27 = vld [vmem:[%s0] sm:$0xff]
  %v28 = vld [vmem:[%s1] sm:$0xff]
  %v29 = vld [vmem:[%s1 + $0x8] sm:$0xff]
  %v30 = vld [vmem:[%s1 + $0x10] sm:$0xff]
  %v31 = vld [vmem:[%s1 + $0x18] sm:$0xff]
  %v32 = vld [vmem:[%s1 + $0x20] sm:$0xff]
  %v33 = vld [vmem:[%s1 + $0x28] sm:$0xff]
  %v34 = vld [vmem:[%s2] sm:$0x1]
  %v36 = vlaneseq
  %v37 = vshrl.u32 %v36, 7
  %v38 = vsub.s32 0, %v37
  %v39 = vrot.slane %v34, %v38
  %vm41 = vcmask 392192
  %v43 = vsel %vm41, %v27, 0
  %45 = vmatprep.subr.mxu0 0.0
  %46 = vmatpush1.msra.mxu0 %v28
  %47 = vmatprep.subr.mxu0 0.0
  %48 = vmatpush1.msra.mxu0 %v29
  %49 = vmatprep.subr.mxu0 0.0
  %50 = vmatpush1.msra.mxu0 %v30
  %51 = vmatprep.subr.mxu0 0.0
  %52 = vmatpush1.msra.mxu0 %v31
  %53 = vmatprep.subr.mxu0 0.0
  %54 = vmatpush1.msra.mxu0 %v32
  %55 = vmatprep.subr.mxu0 0.0
  %56 = vmatpush1.msra.mxu0 %v33
  %57 = vmatprep.subr.mxu0 0.0
  %58 = vmatpush1.msra.mxu0 0.0
  %59 = vmatprep.subr.mxu0 0.0
  %60 = vmatpush1.msra.mxu0 0.0
  %61 = vmatprep.subr.mxu0 0.0
  %62 = vmatpush1.msra.mxu0 0.0
  %63 = vmatprep.subr.mxu0 0.0
  %64 = vmatpush1.msra.mxu0 0.0
  %65 = vmatprep.subr.mxu0 0.0
  %66 = vmatpush1.msra.mxu0 0.0
  %67 = vmatprep.subr.mxu0 0.0
  %68 = vmatpush1.msra.mxu0 0.0
  %69 = vmatprep.subr.mxu0 0.0
  %70 = vmatpush1.msra.mxu0 0.0
  %71 = vmatprep.subr.mxu0 0.0
  %72 = vmatpush1.msra.mxu0 0.0
  %73 = vmatprep.subr.mxu0 0.0
  %74 = vmatpush1.msra.mxu0 0.0
  %75 = vmatprep.subr.mxu0 0.0
  %76 = vmatpush1.msra.mxu0 0.0
  %77 = vmatprep.subr.mxu0 0.0
  %78 = vmatpush1.msra.mxu0 0.0
  %79 = vmatprep.subr.mxu0 0.0
  %80 = vmatpush1.msra.mxu0 0.0
  %81 = vmatprep.subr.mxu0 0.0
  %82 = vmatpush1.msra.mxu0 0.0
  %83 = vmatprep.subr.mxu0 0.0
  %84 = vmatpush1.msra.mxu0 0.0
  %85 = vmatprep.subr.mxu0 0.0
  %86 = vmatpush1.msra.mxu0 0.0
  %87 = vmatprep.subr.mxu0 0.0
  %88 = vmatpush1.msra.mxu0 0.0
  %89 = vmatprep.subr.mxu0 0.0
  %90 = vmatpush1.msra.mxu0 0.0
  %91 = vmatprep.subr.mxu0 0.0
  %92 = vmatpush1.msra.mxu0 0.0
  %93 = vmatprep.subr.mxu0 0.0
  %94 = vmatpush1.msra.mxu0 0.0
  %95 = vmatprep.subr.mxu0 0.0
  %96 = vmatpush1.msra.mxu0 0.0
  %97 = vmatprep.subr.mxu0 0.0
  %98 = vmatpush1.msra.mxu0 0.0
  %99 = vmatprep.subr.mxu0 0.0
  %100 = vmatpush1.msra.mxu0 0.0
  %101 = vmatprep.subr.mxu0 0.0
  %102 = vmatpush1.msra.mxu0 0.0
  %103 = vmatprep.subr.mxu0 0.0
  %104 = vmatpush1.msra.mxu0 0.0
  %105 = vmatprep.subr.mxu0 0.0
  %106 = vmatpush1.msra.mxu0 0.0
  %107 = vmatprep.subr.mxu0 0.0
  %108 = vmatpush1.msra.mxu0 0.0
  %109 = vmatprep.mubr.f32.mxu0 0.0
  %110 = vmatmul.mubr.f32.gmra.mrb[0].mxu0 %v43
  %v111 = vpop.f32.mrb[0].mxu0
  %v112 = vadd.f32 %v39, %v111
  %v113 = vpop.f32.mrb[0].mxu0
  %114 = vdwg.mxu0
  %v115 = vmax.f32 %v112, 0.0
  %v116 = vld [vmem:[%s3] sm:$0xff]
  %v117 = vld [vmem:[%s3 + $0x8] sm:$0xff]
  %v118 = vld [vmem:[%s3 + $0x10] sm:$0xff]
  %v119 = vld [vmem:[%s3 + $0x18] sm:$0xff]
  %v120 = vld [vmem:[%s3 + $0x20] sm:$0xff]
  %v121 = vld [vmem:[%s3 + $0x28] sm:$0xff]
  %v122 = vld [vmem:[%s3 + $0x30] sm:$0xff]
  %v123 = vld [vmem:[%s3 + $0x38] sm:$0xff]
  %v124 = vld [vmem:[%s4] sm:$0x1]
  %v126 = vlaneseq
  %v127 = vshrl.u32 %v126, 7
  %v128 = vsub.s32 0, %v127
  %v129 = vrot.slane %v124, %v128
  %vm131 = vcmask 523264
  %v133 = vsel %vm131, %v115, 0
  %135 = vmatprep.subr.mxu0 0.0
  %136 = vmatpush1.msra.mxu0 %v116
  %137 = vmatprep.subr.mxu0 0.0
  %138 = vmatpush1.msra.mxu0 %v117
  %139 = vmatprep.subr.mxu0 0.0
  %140 = vmatpush1.msra.mxu0 %v118
  %141 = vmatprep.subr.mxu0 0.0
  %142 = vmatpush1.msra.mxu0 %v119
  %143 = vmatprep.subr.mxu0 0.0
  %144 = vmatpush1.msra.mxu0 %v120
  %145 = vmatprep.subr.mxu0 0.0
  %146 = vmatpush1.msra.mxu0 %v121
  %147 = vmatprep.subr.mxu0 0.0
  %148 = vmatpush1.msra.mxu0 %v122
  %149 = vmatprep.subr.mxu0 0.0
  %150 = vmatpush1.msra.mxu0 %v123
  %151 = vmatprep.subr.mxu0 0.0
  %152 = vmatpush1.msra.mxu0 0.0
  %153 = vmatprep.subr.mxu0 0.0
  %154 = vmatpush1.msra.mxu0 0.0
  %155 = vmatprep.subr.mxu0 0.0
  %156 = vmatpush1.msra.mxu0 0.0
  %157 = vmatprep.subr.mxu0 0.0
  %158 = vmatpush1.msra.mxu0 0.0
  %159 = vmatprep.subr.mxu0 0.0
  %160 = vmatpush1.msra.mxu0 0.0
  %161 = vmatprep.subr.mxu0 0.0
  %162 = vmatpush1.msra.mxu0 0.0
  %163 = vmatprep.subr.mxu0 0.0
  %164 = vmatpush1.msra.mxu0 0.0
  %165 = vmatprep.subr.mxu0 0.0
  %166 = vmatpush1.msra.mxu0 0.0
  %167 = vmatprep.subr.mxu0 0.0
  %168 = vmatpush1.msra.mxu0 0.0
  %169 = vmatprep.subr.mxu0 0.0
  %170 = vmatpush1.msra.mxu0 0.0
  %171 = vmatprep.subr.mxu0 0.0
  %172 = vmatpush1.msra.mxu0 0.0
  %173 = vmatprep.subr.mxu0 0.0
  %174 = vmatpush1.msra.mxu0 0.0
  %175 = vmatprep.subr.mxu0 0.0
  %176 = vmatpush1.msra.mxu0 0.0
  %177 = vmatprep.subr.mxu0 0.0
  %178 = vmatpush1.msra.mxu0 0.0
  %179 = vmatprep.subr.mxu0 0.0
  %180 = vmatpush1.msra.mxu0 0.0
  %181 = vmatprep.subr.mxu0 0.0
  %182 = vmatpush1.msra.mxu0 0.0
  %183 = vmatprep.subr.mxu0 0.0
  %184 = vmatpush1.msra.mxu0 0.0
  %185 = vmatprep.subr.mxu0 0.0
  %186 = vmatpush1.msra.mxu0 0.0
  %187 = vmatprep.subr.mxu0 0.0
  %188 = vmatpush1.msra.mxu0 0.0
  %189 = vmatprep.subr.mxu0 0.0
  %190 = vmatpush1.msra.mxu0 0.0
  %191 = vmatprep.subr.mxu0 0.0
  %192 = vmatpush1.msra.mxu0 0.0
  %193 = vmatprep.subr.mxu0 0.0
  %194 = vmatpush1.msra.mxu0 0.0
  %195 = vmatprep.subr.mxu0 0.0
  %196 = vmatpush1.msra.mxu0 0.0
  %197 = vmatprep.subr.mxu0 0.0
  %198 = vmatpush1.msra.mxu0 0.0
  %199 = vmatprep.mubr.f32.mxu0 0.0
  %200 = vmatmul.mubr.f32.gmra.mrb[0].mxu0 %v133
  %v201 = vpop.f32.mrb[0].mxu0
  %v202 = vadd.f32 %v129, %v201
  %v203 = vpop.f32.mrb[0].mxu0
  %204 = vdwg.mxu0
  %v205 = vmax.f32 %v202, 0.0
  %v206 = vld [vmem:[%s5] sm:$0xff]
  %v207 = vld [vmem:[%s5 + $0x8] sm:$0xff]
  %v208 = vld [vmem:[%s5 + $0x10] sm:$0xff]
  %v209 = vld [vmem:[%s5 + $0x18] sm:$0xff]
  %s210 = sld [smem:[#allocation2]]
  %v211 = vstv %s210
  %vm212 = vcmask 261120
  %v214 = vsel %vm212, %v205, 0
  %216 = vmatprep.subr.mxu0 0.0
  %217 = vmatpush1.msra.mxu0 %v206
  %218 = vmatprep.subr.mxu0 0.0
  %219 = vmatpush1.msra.mxu0 %v207
  %220 = vmatprep.subr.mxu0 0.0
  %221 = vmatpush1.msra.mxu0 %v208
  %222 = vmatprep.subr.mxu0 0.0
  %223 = vmatpush1.msra.mxu0 %v209
  %224 = vmatprep.subr.mxu0 0.0
  %225 = vmatpush1.msra.mxu0 0.0
  %226 = vmatprep.subr.mxu0 0.0
  %227 = vmatpush1.msra.mxu0 0.0
  %228 = vmatprep.subr.mxu0 0.0
  %229 = vmatpush1.msra.mxu0 0.0
  %230 = vmatprep.subr.mxu0 0.0
  %231 = vmatpush1.msra.mxu0 0.0
  %232 = vmatprep.subr.mxu0 0.0
  %233 = vmatpush1.msra.mxu0 0.0
  %234 = vmatprep.subr.mxu0 0.0
  %235 = vmatpush1.msra.mxu0 0.0
  %236 = vmatprep.subr.mxu0 0.0
  %237 = vmatpush1.msra.mxu0 0.0
  %238 = vmatprep.subr.mxu0 0.0
  %239 = vmatpush1.msra.mxu0 0.0
  %240 = vmatprep.subr.mxu0 0.0
  %241 = vmatpush1.msra.mxu0 0.0
  %242 = vmatprep.subr.mxu0 0.0
  %243 = vmatpush1.msra.mxu0 0.0
  %244 = vmatprep.subr.mxu0 0.0
  %245 = vmatpush1.msra.mxu0 0.0
  %246 = vmatprep.subr.mxu0 0.0
  %247 = vmatpush1.msra.mxu0 0.0
  %248 = vmatprep.subr.mxu0 0.0
  %249 = vmatpush1.msra.mxu0 0.0
  %250 = vmatprep.subr.mxu0 0.0
  %251 = vmatpush1.msra.mxu0 0.0
  %252 = vmatprep.subr.mxu0 0.0
  %253 = vmatpush1.msra.mxu0 0.0
  %254 = vmatprep.subr.mxu0 0.0
  %255 = vmatpush1.msra.mxu0 0.0
  %256 = vmatprep.subr.mxu0 0.0
  %257 = vmatpush1.msra.mxu0 0.0
  %258 = vmatprep.subr.mxu0 0.0
  %259 = vmatpush1.msra.mxu0 0.0
  %260 = vmatprep.subr.mxu0 0.0
  %261 = vmatpush1.msra.mxu0 0.0
  %262 = vmatprep.subr.mxu0 0.0
  %263 = vmatpush1.msra.mxu0 0.0
  %264 = vmatprep.subr.mxu0 0.0
  %265 = vmatpush1.msra.mxu0 0.0
  %266 = vmatprep.subr.mxu0 0.0
  %267 = vmatpush1.msra.mxu0 0.0
  %268 = vmatprep.subr.mxu0 0.0
  %269 = vmatpush1.msra.mxu0 0.0
  %270 = vmatprep.subr.mxu0 0.0
  %271 = vmatpush1.msra.mxu0 0.0
  %272 = vmatprep.subr.mxu0 0.0
  %273 = vmatpush1.msra.mxu0 0.0
  %274 = vmatprep.subr.mxu0 0.0
  %275 = vmatpush1.msra.mxu0 0.0
  %276 = vmatprep.subr.mxu0 0.0
  %277 = vmatpush1.msra.mxu0 0.0
  %278 = vmatprep.subr.mxu0 0.0
  %279 = vmatpush1.msra.mxu0 0.0
  %280 = vmatprep.mubr.f32.mxu0 0.0
  %281 = vmatmul.mubr.f32.gmra.mrb[0].mxu0 %v214
  %v282 = vpop.f32.mrb[0].mxu0
  %v283 = vadd.f32 %v211, %v282
  %v284 = vpop.f32.mrb[0].mxu0
  %285 = vdwg.mxu0
  %vm286 = vcmask 7168
  %287 = vst.msk [vmem:[%s7] sm:$0xff] %vm286, %v283
  // Predicated region
  $region30: #{tpu_custom_call.1} parent=0 // pred_check
    _
  $region31: #{tpu_custom_call.1} parent=0 // pred_check_branch
    %289 = sbr.rel (0) target = $region33
  $region32: #{tpu_custom_call.1} parent=0 // pred_region
    _
  $region33: #{tpu_custom_call.1} parent=0 // pred_fallthru
    _
  // Predicated region
  $region34: #{tpu_custom_call.1} parent=0 // pred_check
    _
  $region35: #{tpu_custom_call.1} parent=0 // pred_check_branch
    %291 = sbr.rel (0) target = $region37
  $region36: #{tpu_custom_call.1} parent=0 // pred_region
    _
  $region37: #{tpu_custom_call.1} parent=0 // pred_fallthru
    _

</llo_original>
